<compile_context>
chip_gen: v7x
topology: tpu7x:2x2x1
jax: 0.10.0
libtpu: 0.0.40
codegen_flags: <defaults>
</compile_context>

<pallas_src>
import functools

import jax
import jax.numpy as jnp
from jax.experimental import pallas as pl
from jax.experimental.pallas import tpu as pltpu


def _label_smoothing_loss_kernel(pred_ref, tgt_ref, out_ref, acc_ref, *,
                                 smoothing, batch_size, block_rows,
                                 tiles_per_core):
    core = pl.program_id(0)
    t = pl.program_id(1)

    @pl.when(t == 0)
    def _init():
        acc_ref[...] = jnp.zeros_like(acc_ref)

    logits = pred_ref[...].astype(jnp.float32)               # (TB, C)
    tb, c = logits.shape

    confidence = 1.0 - smoothing
    off_value = smoothing / (c - 1)
    total_mass = confidence + off_value * (c - 1)            # == 1.0 exactly

    # Numerically stable log-softmax pieces (no full logp / true_dist tensors).
    m = jnp.max(logits, axis=-1, keepdims=True)              # (TB, 1)
    shifted = logits - m                                      # (TB, C)
    lse = jnp.log(jnp.sum(jnp.exp(shifted), axis=-1, keepdims=True))  # (TB, 1)

    # Single fused weighted reduction over the class dim:
    #   sum_j true_dist[j] * logp[j] = weighted - total_mass * lse
    # NOTE: targets outside [0, C) silently get the uniform off_value weight
    # (PyTorch's scatter_ would be undefined/raise); no ignore_index support.
    cls_ids = jax.lax.broadcasted_iota(jnp.int32, (tb, c), 1)
    tgt = tgt_ref[...]                                        # (TB, 1) int32
    w = jnp.where(cls_ids == tgt, confidence, off_value)      # (TB, C)
    weighted = jnp.sum(shifted * w, axis=-1, keepdims=True)   # (TB, 1)

    row_loss = total_mass * lse - weighted                    # (TB, 1)

    # Mask padded rows of ragged / overhanging (clamped) tiles with a select,
    # so garbage/NaN in the pad region cannot leak into the accumulator.
    g = core * tiles_per_core + t                             # global tile id
    row_ids = (jax.lax.broadcasted_iota(jnp.int32, (tb, 1), 0)
               + g * block_rows)
    row_loss = jnp.where(row_ids < batch_size, row_loss, 0.0)

    # Pure VALU accumulation; no per-step cross-sublane collapse.
    acc_ref[...] += row_loss

    @pl.when(t == pl.num_programs(1) - 1)
    def _finalize():
        partial = jnp.sum(acc_ref[...], keepdims=True)        # (1, 1)
        out_ref[...] = jnp.broadcast_to(partial, out_ref.shape)


def _vmem_budget():
    """Returns (f32 working-block byte budget, scoped vmem_limit_bytes)."""
    vmem_cap = None
    try:
        info = pltpu.get_tpu_info()
        for attr in ("vmem_capacity_bytes", "vmem_bytes", "vmem_size_bytes"):
            v = getattr(info, attr, None)
            if v:
                vmem_cap = int(v)
                break
    except Exception:
        vmem_cap = None
    if vmem_cap is not None and vmem_cap >= 100 * 1024 * 1024:
        # v5e / v6e: 128 MiB physical VMEM per TensorCore.
        return 8 * 1024 * 1024, 64 * 1024 * 1024
    # v7x (64 MiB per TC) or unknown: stay conservative.
    return 4 * 1024 * 1024, 32 * 1024 * 1024


def _choose_batch_tile(batch, classes, itemsize, budget_bytes, block_rows=None):
    # Round rows to the dtype's sublane packing (8 for f32, 16 bf16, 32 int8)
    # so packed sublane groups never straddle a tile edge.
    mult = max(8, 32 // max(1, itemsize))
    max_tb = max(mult, (budget_bytes // max(1, classes * 4)) // mult * mult)
    if block_rows is not None:
        tb = max(mult, (min(int(block_rows), max_tb) // mult) * mult)
    else:
        tb = max_tb
    if batch <= tb:
        return batch          # single tile; block dim == full array dim is legal
    return tb                 # sublane-multiple; ragged last tile masked in-kernel


def label_smoothing_loss(pred, target, num_classes, smoothing=0.1,
                         block_rows=None):
    """pred: (B, num_classes) float (f32 or bf16); target: (B,) int.

    Returns the scalar label-smoothed cross-entropy (batch mean), matching the
    PyTorch LabelSmoothingLoss forward.
    """
    B, C = pred.shape
    assert C == num_classes
    assert 0 <= smoothing < 1
    assert num_classes > 1, "smoothing / (num_classes - 1) requires num_classes > 1"

    tgt2d = target.astype(jnp.int32).reshape(B, 1)

    f32_block_budget, vmem_limit = _vmem_budget()
    TB = _choose_batch_tile(B, C, jnp.dtype(pred.dtype).itemsize,
                            f32_block_budget, block_rows)
    num_tiles = pl.cdiv(B, TB)

    # Megacore: split the tile reduction across (up to) 2 TensorCores via a
    # leading "parallel" grid axis with per-core partial outputs.
    nc = 2 if num_tiles >= 2 else 1
    tiles_per_core = pl.cdiv(num_tiles, nc)

    def tile_index(c, t):
        g = c * tiles_per_core + t
        return (jnp.minimum(g, num_tiles - 1), 0)   # clamp overhang; masked in-kernel

    kernel = functools.partial(
        _label_smoothing_loss_kernel,
        smoothing=float(smoothing), batch_size=B, block_rows=TB,
        tiles_per_core=tiles_per_core)

    out = pl.pallas_call(
        kernel,
        out_shape=jax.ShapeDtypeStruct((nc * 8, 128), jnp.float32),
        grid=(nc, tiles_per_core),
        in_specs=[
            pl.BlockSpec((TB, C), tile_index),   # pred batch tile
            pl.BlockSpec((TB, 1), tile_index),   # target batch tile
        ],
        # Each core owns a private lane-dense (8,128) block holding its partial.
        out_specs=pl.BlockSpec((8, 128), lambda c, t: (c, 0)),
        scratch_shapes=[pltpu.VMEM((TB, 1), jnp.float32)],   # per-core running sum
        compiler_params=pltpu.CompilerParams(
            dimension_semantics=("parallel", "arbitrary"),
            vmem_limit_bytes=vmem_limit),
    )(pred, tgt2d)

    partials = out[::8, 0]                       # one value per core block
    return jnp.sum(partials) * (1.0 / B)


def _reference(pred, target, num_classes, smoothing=0.1):
    confidence = 1.0 - smoothing
    logp = jax.nn.log_softmax(pred.astype(jnp.float32), axis=-1)
    true_dist = jnp.full_like(logp, smoothing / (num_classes - 1))
    true_dist = true_dist.at[jnp.arange(pred.shape[0]), target].set(confidence)
    return jnp.mean(jnp.sum(-true_dist * logp, axis=-1))


if __name__ == "__main__":
    key = jax.random.PRNGKey(0)
    k_pred, k_tgt, k_pred2, k_tgt2 = jax.random.split(key, 4)

    # Small shape consistent with the module (Keyword-MLP style classifier).
    B, NUM_CLASSES = 8, 32
    pred = jax.random.normal(k_pred, (B, NUM_CLASSES), dtype=jnp.float32)
    target = jax.random.randint(k_tgt, (B,), 0, NUM_CLASSES, dtype=jnp.int32)

    loss = label_smoothing_loss(pred, target, NUM_CLASSES, smoothing=0.1)
    loss = jax.block_until_ready(loss)
    ref = _reference(pred, target, NUM_CLASSES, smoothing=0.1)
    assert jnp.allclose(loss, ref, atol=1e-5, rtol=1e-5), (loss, ref)

    # Exercise the multi-tile, megacore-split, ragged-last-tile path.
    B2 = 20
    pred2 = jax.random.normal(k_pred2, (B2, NUM_CLASSES), dtype=jnp.float32)
    target2 = jax.random.randint(k_tgt2, (B2,), 0, NUM_CLASSES, dtype=jnp.int32)
    loss2 = label_smoothing_loss(pred2, target2, NUM_CLASSES, smoothing=0.1,
                                 block_rows=8)
    loss2 = jax.block_until_ready(loss2)
    ref2 = _reference(pred2, target2, NUM_CLASSES, smoothing=0.1)
    assert jnp.allclose(loss2, ref2, atol=1e-5, rtol=1e-5), (loss2, ref2)

    # bf16 input path (16-row sublane rounding, f32 accumulation).
    pred3 = pred2.astype(jnp.bfloat16)
    loss3 = label_smoothing_loss(pred3, target2, NUM_CLASSES, smoothing=0.1)
    loss3 = jax.block_until_ready(loss3)
    ref3 = _reference(pred3, target2, NUM_CLASSES, smoothing=0.1)
    assert jnp.allclose(loss3, ref3, atol=1e-2, rtol=1e-2), (loss3, ref3)

    print("KERNEL_OK")
</pallas_src>

<mosaic_0001>
module attributes {stable_mosaic.version = 11 : i64} {
  func.func @_label_smoothing_loss_kernel(%arg0: i32, %arg1: i32, %arg2: memref<8x32xf32, #tpu.memory_space<vmem>>, %arg3: memref<8x1xi32, #tpu.memory_space<vmem>>, %arg4: memref<8x128xf32, #tpu.memory_space<vmem>>, %arg5: memref<8x1xf32, #tpu.memory_space<vmem>>) attributes {dimension_semantics = [#tpu.dimension_semantics<parallel>, #tpu.dimension_semantics<arbitrary>], iteration_bounds = array<i64: 1, 1>, scalar_prefetch = 0 : i64, scratch_operands = 1 : i64, tpu.core_type = #tpu.core_type<tc>, window_params = [{transform_indices = @transform_0, window_bounds = array<i64: 8, 32>}, {transform_indices = @transform_1, window_bounds = array<i64: 8, 1>}, {transform_indices = @transform_2, window_bounds = array<i64: 8, 128>}]} {
    %c0_i32 = arith.constant 0 : i32
    %0 = arith.cmpi eq, %arg1, %c0_i32 : i32
    %1 = arith.extui %0 : i1 to i32
    %c0_i32_0 = arith.constant 0 : i32
    %2 = arith.cmpi ne, %1, %c0_i32_0 : i32
    scf.if %2 {
      %cst_17 = arith.constant 0.000000e+00 : f32
      %41 = vector.broadcast %cst_17 : f32 to vector<8x1xf32>
      %c0_18 = arith.constant 0 : index
      %c0_19 = arith.constant 0 : index
      %42 = vector.load %arg5[%c0_18, %c0_19] : memref<8x1xf32, #tpu.memory_space<vmem>>, vector<8x1xf32>
      tpu.vector_store %arg5[%c0_18, %c0_19], %41 {strides = array<i32>} : memref<8x1xf32, #tpu.memory_space<vmem>>, vector<8x1xf32>,
    } else {
    }
    %c0 = arith.constant 0 : index
    %c0_1 = arith.constant 0 : index
    %3 = vector.load %arg2[%c0, %c0_1] : memref<8x32xf32, #tpu.memory_space<vmem>>, vector<8x32xf32>
    %cst = arith.constant dense<0xFF800000> : vector<8xf32>
    %4 = vector.multi_reduction <maximumf>, %3, %cst [1] : vector<8x32xf32> to vector<8xf32>
    %5 = vector.shape_cast %4 : vector<8xf32> to vector<8x1xf32>
    %6 = vector.broadcast %5 : vector<8x1xf32> to vector<8x32xf32>
    %7 = arith.subf %3, %6 : vector<8x32xf32>
    %8 = math.exp %7 : vector<8x32xf32>
    %cst_2 = arith.constant dense<0.000000e+00> : vector<8xf32>
    %9 = vector.multi_reduction <add>, %8, %cst_2 [1] : vector<8x32xf32> to vector<8xf32>
    %10 = vector.shape_cast %9 : vector<8xf32> to vector<8x1xf32>
    %11 = math.log %10 : vector<8x1xf32>
    %12 = tpu.iota {dimensions = array<i32: 1>} : vector<8x32xi32>
    %c0_3 = arith.constant 0 : index
    %c0_4 = arith.constant 0 : index
    %13 = vector.load %arg3[%c0_3, %c0_4] : memref<8x1xi32, #tpu.memory_space<vmem>>, vector<8x1xi32>
    %14 = vector.broadcast %13 : vector<8x1xi32> to vector<8x32xi32>
    %15 = arith.cmpi eq, %12, %14 : vector<8x32xi32>
    %cst_5 = arith.constant 0.899999976 : f32
    %cst_6 = arith.constant 0.0032258064 : f32
    %16 = vector.broadcast %cst_5 : f32 to vector<8x32xf32>
    %17 = vector.broadcast %cst_6 : f32 to vector<8x32xf32>
    %18 = arith.select %15, %16, %17 : vector<8x32xi1>, vector<8x32xf32>
    %19 = arith.mulf %7, %18 : vector<8x32xf32>
    %cst_7 = arith.constant dense<0.000000e+00> : vector<8xf32>
    %20 = vector.multi_reduction <add>, %19, %cst_7 [1] : vector<8x32xf32> to vector<8xf32>
    %21 = vector.shape_cast %20 : vector<8xf32> to vector<8x1xf32>
    %cst_8 = arith.constant 1.000000e+00 : f32
    %22 = vector.broadcast %cst_8 : f32 to vector<8x1xf32>
    %23 = arith.mulf %22, %11 : vector<8x1xf32>
    %24 = arith.subf %23, %21 : vector<8x1xf32>
    %c1_i32 = arith.constant 1 : i32
    %25 = arith.muli %arg0, %c1_i32 : i32
    %26 = arith.addi %25, %arg1 : i32
    %27 = tpu.iota {dimensions = array<i32: 0>} : vector<8x1xi32>
    %c8_i32 = arith.constant 8 : i32
    %28 = arith.muli %26, %c8_i32 : i32
    %29 = vector.broadcast %28 : i32 to vector<8x1xi32>
    %30 = arith.addi %27, %29 : vector<8x1xi32>
    %c8_i32_9 = arith.constant 8 : i32
    %31 = vector.broadcast %c8_i32_9 : i32 to vector<8x1xi32>
    %32 = arith.cmpi slt, %30, %31 : vector<8x1xi32>
    %cst_10 = arith.constant 0.000000e+00 : f32
    %33 = vector.broadcast %cst_10 : f32 to vector<8x1xf32>
    %34 = arith.select %32, %24, %33 : vector<8x1xi1>, vector<8x1xf32>
    %c0_11 = arith.constant 0 : index
    %c0_12 = arith.constant 0 : index
    %35 = vector.load %arg5[%c0_11, %c0_12] : memref<8x1xf32, #tpu.memory_space<vmem>>, vector<8x1xf32>
    %36 = arith.addf %35, %34 : vector<8x1xf32>
    %c0_13 = arith.constant 0 : index
    %c0_14 = arith.constant 0 : index
    %37 = vector.load %arg5[%c0_13, %c0_14] : memref<8x1xf32, #tpu.memory_space<vmem>>, vector<8x1xf32>
    tpu.vector_store %arg5[%c0_13, %c0_14], %36 {strides = array<i32>} : memref<8x1xf32, #tpu.memory_space<vmem>>, vector<8x1xf32>,
    %c0_i32_15 = arith.constant 0 : i32
    %38 = arith.cmpi eq, %arg1, %c0_i32_15 : i32
    %39 = arith.extui %38 : i1 to i32
    %c0_i32_16 = arith.constant 0 : i32
    %40 = arith.cmpi ne, %39, %c0_i32_16 : i32
    scf.if %40 {
      %c0_17 = arith.constant 0 : index
      %c0_18 = arith.constant 0 : index
      %41 = vector.load %arg5[%c0_17, %c0_18] : memref<8x1xf32, #tpu.memory_space<vmem>>, vector<8x1xf32>
      %42 = vector.shape_cast %41 : vector<8x1xf32> to vector<1x8x1xf32>
      %cst_19 = arith.constant dense<0.000000e+00> : vector<1xf32>
      %43 = vector.multi_reduction <add>, %42, %cst_19 [1, 2] : vector<1x8x1xf32> to vector<1xf32>
      %44 = vector.shape_cast %43 : vector<1xf32> to vector<1x1x1xf32>
      %45 = vector.extract %44[0, 0, 0] : f32 from vector<1x1x1xf32>
      %46 = vector.broadcast %45 : f32 to vector<1x1xf32>
      %47 = vector.shape_cast %46 : vector<1x1xf32> to vector<1x1xf32>
      %48 = vector.broadcast %47 : vector<1x1xf32> to vector<8x128xf32>
      %c0_20 = arith.constant 0 : index
      %c0_21 = arith.constant 0 : index
      %49 = vector.load %arg4[%c0_20, %c0_21] : memref<8x128xf32, #tpu.memory_space<vmem>>, vector<8x128xf32>
      tpu.vector_store %arg4[%c0_20, %c0_21], %48 {strides = array<i32>} : memref<8x128xf32, #tpu.memory_space<vmem>>, vector<8x128xf32>,
    } else {
    }
    return
  }
  func.func @transform_0(%arg0: i32, %arg1: i32) -> (i32, i32) {
    %c1_i32 = arith.constant 1 : i32
    %0 = arith.muli %arg0, %c1_i32 : i32
    %1 = arith.addi %0, %arg1 : i32
    %c0_i32 = arith.constant 0 : i32
    %2 = arith.minsi %1, %c0_i32 : i32
    %c0_i32_0 = arith.constant 0 : i32
    %c0_i32_1 = arith.constant 0 : i32
    return %2, %c0_i32_0 : i32, i32
  }
  func.func @transform_1(%arg0: i32, %arg1: i32) -> (i32, i32) {
    %c1_i32 = arith.constant 1 : i32
    %0 = arith.muli %arg0, %c1_i32 : i32
    %1 = arith.addi %0, %arg1 : i32
    %c0_i32 = arith.constant 0 : i32
    %2 = arith.minsi %1, %c0_i32 : i32
    %c0_i32_0 = arith.constant 0 : i32
    %c0_i32_1 = arith.constant 0 : i32
    return %2, %c0_i32_0 : i32, i32
  }
  func.func @transform_2(%arg0: i32, %arg1: i32) -> (i32, i32) {
    %c0_i32 = arith.constant 0 : i32
    %c0_i32_0 = arith.constant 0 : i32
    return %arg0, %c0_i32 : i32, i32
  }
}

</mosaic_0001>

<llo_original>
// kernel: tpu_custom_call.1
$region0: #{tpu_custom_call.1}
  #allocation0 [shape = 'u32[]', space=smem, size = 0x4, offset = 0x4, fixed_abs, tag = 'smem constant byte address 0x4 - core index']
  #allocation1 [shape = 'u32[144,128]{1,0:T(1,128)}', space=vmem, size = 0x12000, scoped, tag = 'internal scratch']
  #allocation2 [shape = 'f32[8,1]{1,0:T(8,128)}', space=vmem, size = 0x1000, scoped, tag = 'scratch operand']
  %s0 = inlined_call_operand.vmem [shape: f32[8,32], index: 0, kind: input, shape index: {}]
  %s1 = inlined_call_operand.vmem [shape: s32[8,1], index: 1, kind: input, shape index: {}]
  %s2 = inlined_call_operand.hbm [shape: f32[8,128], index: 2, kind: output, shape index: {}]
  %s3 = sld [smem:[#allocation0]]
  $region26: #{tpu_custom_call.1} parent=0
    _
  %s5 = ssub.s32 1, %s3
  %s6 = scalar_select 0, %s5, %s3
  $region1: #{tpu_custom_call.1} parent=0
    #allocation3 [shape = 'u8[4096]{0}', space=vmem, size = 0x1000, scoped, tag = 'output window, operand 0, single buffered']
    #allocation4 [shape = 's32[1]{0}', space=sflag, size = 0x4, scoped, tag = 'scoped memory for tpu_custom_call.1']
    %7 = vsyncpa [#allocation4], 0
    // Predicated region
    $region2: #{tpu_custom_call.1} parent=1 // pred_check
      _
    $region3: #{tpu_custom_call.1} parent=1 // pred_check_branch
      %9 = sbr.rel (0) target = $region5
    $region4: #{tpu_custom_call.1} parent=1 // pred_region
      %s10 = sadd.s32 0, 0
      %p11 = scmp.lt.s32.totalorder %s10, 0
      %s12 = scalar_select %p11, %s10, 0
      %p13 = scmp.lt.s32.totalorder %s12, 0
      %s14 = scalar_select %p13, %s12, 0
      %s15 = smul.addr %s14, 8
      %s16 = scalar_lea.vmem %s0, %s15
      %s17 = sadd.s32 0, 0
      %p18 = scmp.lt.s32.totalorder %s17, 0
      %s19 = scalar_select %p18, %s17, 0
    $region5: #{tpu_custom_call.1} parent=1 // pred_fallthru
      _
    // Predicated region
    $region6: #{tpu_custom_call.1} parent=1 // pred_check
      _
    $region7: #{tpu_custom_call.1} parent=1 // pred_check_branch
      %21 = sbr.rel (0) target = $region9
    $region8: #{tpu_custom_call.1} parent=1 // pred_region
      %s22 = sadd.s32 0, 0
      %p23 = scmp.lt.s32.totalorder %s22, 0
      %s24 = scalar_select %p23, %s22, 0
      %p25 = scmp.lt.s32.totalorder %s24, 0
      %s26 = scalar_select %p25, %s24, 0
      %s27 = smul.addr %s26, 8
      %s28 = scalar_lea.vmem %s1, %s27
      %s29 = sadd.s32 0, 0
      %p30 = scmp.lt.s32.totalorder %s29, 0
      %s31 = scalar_select %p30, %s29, 0
    $region9: #{tpu_custom_call.1} parent=1 // pred_fallthru
      _
    %s32 = sadd.s32 0, 0
    %p33 = scmp.lt.s32.totalorder %s32, 0
    %s34 = scalar_select %p33, %s32, 0
    %p35 = scmp.lt.s32.totalorder %s34, 0
    %s36 = scalar_select %p35, %s34, 0
    %s37 = smul.addr %s36, 8
    %s38 = scalar_lea.vmem %s0, %s37
    %s39 = sadd.s32 0, 0
    %p40 = scmp.lt.s32.totalorder %s39, 0
    %s41 = scalar_select %p40, %s39, 0
    %p42 = scmp.lt.s32.totalorder %s41, 0
    %s43 = scalar_select %p42, %s41, 0
    %s44 = smul.addr %s43, 8
    %s45 = scalar_lea.vmem %s1, %s44
    %s46 = sadd.s32 0, 0
    %p47 = scmp.lt.s32.totalorder %s46, 0
    %s48 = scalar_select %p47, %s46, 0
    %p49 = scmp.lt.s32.totalorder %s48, 0
    %s50 = scalar_select %p49, %s48, 0
    %s51 = smul.addr %s50, 8
    %s52 = scalar_lea.vmem %s0, %s51
    %s53 = sadd.s32 0, 0
    %p54 = scmp.lt.s32.totalorder %s53, 0
    %s55 = scalar_select %p54, %s53, 0
    %s56 = sadd.s32 0, 0
    %p57 = scmp.lt.s32.totalorder %s56, 0
    %s58 = scalar_select %p57, %s56, 0
    %p59 = scmp.lt.s32.totalorder %s58, 0
    %s60 = scalar_select %p59, %s58, 0
    %s61 = smul.addr %s60, 8
    %s62 = scalar_lea.vmem %s1, %s61
    %s63 = sadd.s32 0, 0
    %p64 = scmp.lt.s32.totalorder %s63, 0
    %s65 = scalar_select %p64, %s63, 0
    %p66 = scmp.eq.s32.totalorder 0, 0
    // Predicated region
    $region10: #{tpu_custom_call.1} parent=1 // pred_check
      %p67 = pneg %p66
    $region11: #{tpu_custom_call.1} parent=1 // pred_check_branch
      %69 = sbr.rel (%p67) target = $region13
    $region12: #{tpu_custom_call.1} parent=1 // pred_region
      %vm70 = vcmask 7168
      %71 = vst.msk [vmem:[#allocation2] sm:$0xff] %vm70, 0.0
    $region13: #{tpu_custom_call.1} parent=1 // pred_fallthru
      _
    %v72 = vld [vmem:[%s52] sm:$0xff]
    %vm73 = vcmask 261120
    %v74 = vsel %vm73, %v72, -inf
    %75 = vmax.xlane.f32.xlu0 %v74
    %v76 = vpop.xlane.xlu0 %75
    %v77 = vsub.f32 %v72, %v76
    %v78 = vmul.f32 %v77, 1.442695
    %v79 = vpow.pop %v78
    %v80 = vsel %vm73, %v79, 0.0
    %81 = vadd.xlane.f32.xlu0 %v80
    %v82 = vpop.xlane.xlu0 %81
    %v83 = vlog2.pop %v82
    %v84 = vmul.f32 %v83, 0.6931472
    %v85 = vlaneseq
    %v86 = vand.u32 %v85, 127
    %v87 = vld [vmem:[%s62] sm:$0xff]
    %88 = vset.pattern.permute.xlu0 0
    %89 = vperm.xlu0 %88, %v87
    %v90 = vpop.permute.xlu0 %89
    %vm91 = vcmp.eq.s32.totalorder %v86, %v90
    %v92 = vsel %vm91, 0.9, 0.0032258064
    %v93 = vmul.f32 %v77, %v92
    %v94 = vsel %vm73, %v93, 0.0
    %95 = vadd.xlane.f32.xlu0 %v94
    %v96 = vpop.xlane.xlu0 %95
    %v97 = vsub.f32 %v84, %v96
    %s98 = sadd.s32 0, 0
    %v99 = vlaneseq
    %v100 = vshrl.u32 %v99, 7
    %s101 = smul.u32 %s98, 8
    %v102 = vstv %s101
    %v103 = vadd.s32 %v100, %v102
    %vm104 = vcmp.lt.s32.totalorder %v103, 8
    %v105 = vsel %vm104, %v97, 0.0
    %v106 = vld [vmem:[#allocation2] sm:$0xff]
    %v107 = vadd.f32 %v106, %v105
    %vm108 = vcmask 7168
    %109 = vst.msk [vmem:[#allocation2] sm:$0xff] %vm108, %v107
    // Predicated region
    $region14: #{tpu_custom_call.1} parent=1 // pred_check
      %p110 = pneg %p66
    $region15: #{tpu_custom_call.1} parent=1 // pred_check_branch
      %112 = sbr.rel (%p110) target = $region17
    $region16: #{tpu_custom_call.1} parent=1 // pred_region
      %v113 = vld [vmem:[#allocation2] sm:$0xff]
      %v114 = vsel %vm108, %v113, 0.0
      %115 = vadd.xlane.f32.xlu0 %v114
      %v116 = vpop.xlane.xlu0 %115
      %v117 = vrot.slane %v116, 4
      %v118 = vadd.f32 %v116, %v117
      %v119 = vrot.slane %v118, 2
      %v120 = vadd.f32 %v118, %v119
      %v121 = vrot.slane %v120, 1
      %v122 = vadd.f32 %v120, %v121
      %s123 = vtos %v122
      %v124 = vstv %s123
      %125 = vst [vmem:[#allocation3] sm:$0xff] %v124
    $region17: #{tpu_custom_call.1} parent=1 // pred_fallthru
      _
    // Predicated region
    $region18: #{tpu_custom_call.1} parent=1 // pred_check
      _
    $region19: #{tpu_custom_call.1} parent=1 // pred_check_branch
      %127 = sbr.rel (0) target = $region21
    $region20: #{tpu_custom_call.1} parent=1 // pred_region
      %s129 = ssub.s32 128, 128
      %130 = vsyncadd [#allocation4], %s129
      %s132 = sshll.u32 [#allocation3], 4
      %s133 = int_to_ptr.vmem [resolvable:$true] %s132
      %135 = dma.vmem_to_hbm [thread:$0]  %s133, 128, %s2, [#allocation4]
    $region21: #{tpu_custom_call.1} parent=1 // pred_fallthru
      _
    // Predicated region
    $region22: #{tpu_custom_call.1} parent=1 // pred_check
      _
    $region23: #{tpu_custom_call.1} parent=1 // pred_check_branch
      %137 = sbr.rel (0) target = $region25
    $region24: #{tpu_custom_call.1} parent=1 // pred_region
      %138 = dma.done [#allocation4], 128
    $region25: #{tpu_custom_call.1} parent=1 // pred_fallthru
      _
    %139 = vsyncpa [#allocation4], 1

</llo_original>
